<compile_context>
chip_gen: v5e
topology: v5e:2x2
jax: 0.10.0
libtpu: 0.0.40
codegen_flags: <defaults>
</compile_context>

<pallas_src>
import functools

import jax
import jax.numpy as jnp
from jax.experimental import pallas as pl
from jax.experimental.pallas import tpu as pltpu

_LANES = 128
_TARGET_BLOCK_BYTES = 2 * 1024 * 1024  # ~2 MiB blocks: safe on v5e/v6e/v7x defaults


def _relu_kernel(x_ref, o_ref):
    # Pure VPU elementwise max; DMA-bound kernel, compute is free.
    o_ref[...] = jnp.maximum(x_ref[...], 0)


@functools.partial(jax.jit, static_argnames=())
def _relu_forward(x):
    orig_shape = x.shape
    dtype = x.dtype
    n = x.size

    itemsize = jnp.dtype(dtype).itemsize
    # Packed-tile sublane multiple: 8 for f32, 16 for bf16, 32 for int8/fp8.
    sublane_mult = max(8, 32 // max(1, itemsize))

    x_flat = x.reshape(-1)

    # Only pad to a multiple of the lane width (128); ragged row counts are
    # handled by the cdiv grid (Pallas masks the last partial block).
    pad = (-n) % _LANES
    if pad:
        x_flat = jnp.pad(x_flat, (0, pad))

    rows = x_flat.size // _LANES
    x2d = x_flat.reshape(rows, _LANES)

    # Block sizing: ~2 MiB per block; keep sublane dim a multiple of the
    # dtype's packed-tile requirement.
    target_rows = _TARGET_BLOCK_BYTES // (_LANES * itemsize)
    target_rows = max(sublane_mult, (target_rows // sublane_mult) * sublane_mult)

    if rows <= target_rows:
        # Single block covering the whole slab (full-dim block: exempt from the
        # (sublane, 128) divisibility rule).
        tile_rows = rows
        grid = (1,)
    else:
        tile_rows = target_rows
        grid = (pl.cdiv(rows, tile_rows),)  # no divisor search; last block masked

    out2d = pl.pallas_call(
        _relu_kernel,
        out_shape=jax.ShapeDtypeStruct((rows, _LANES), dtype),
        grid_spec=pltpu.PrefetchScalarGridSpec(
            num_scalar_prefetch=0,
            grid=grid,
            in_specs=[pl.BlockSpec((tile_rows, _LANES), lambda i: (i, 0))],
            out_specs=pl.BlockSpec((tile_rows, _LANES), lambda i: (i, 0)),
        ),
        compiler_params=pltpu.CompilerParams(
            dimension_semantics=("parallel",),
        ),
    )(x2d)

    out_flat = out2d.reshape(-1)
    if pad:
        out_flat = out_flat[:n]
    return out_flat.reshape(orig_shape)


def relu_pallas(x, bit=None):
    """ReLU(x) = max(x, 0). `bit` is unused by the reference forward (kept for parity)."""
    del bit
    return _relu_forward(x)


class ReLU:
    """JAX/Pallas equivalent of the PyTorch ReLU module (bit is stored but unused)."""

    def __init__(self, bit):
        self.bit = bit

    def __call__(self, x):
        return relu_pallas(x, self.bit)


if __name__ == "__main__":
    key = jax.random.PRNGKey(0)

    # NCHW input consistent with a conv-net activation layer.
    x = jax.random.normal(key, (2, 4, 16, 16), dtype=jnp.float32)
    mod = ReLU(bit=8)
    y = jax.block_until_ready(mod(x))
    ref = jnp.maximum(x, 0.0)
    assert y.shape == x.shape and y.dtype == x.dtype
    assert jnp.allclose(y, ref), "mismatch vs reference ReLU (f32)"

    # Ragged flat size (not a multiple of 128) exercises the pad/slice path.
    x_ragged = jax.random.normal(jax.random.PRNGKey(1), (3, 5, 7, 11), dtype=jnp.float32)
    y_ragged = jax.block_until_ready(relu_pallas(x_ragged))
    assert jnp.allclose(y_ragged, jnp.maximum(x_ragged, 0.0)), "mismatch (ragged)"

    # bf16 exercises the dtype-aware sublane handling.
    x_bf16 = jax.random.normal(jax.random.PRNGKey(2), (2, 4, 16, 16), dtype=jnp.bfloat16)
    y_bf16 = jax.block_until_ready(relu_pallas(x_bf16))
    assert y_bf16.dtype == jnp.bfloat16
    assert jnp.allclose(y_bf16.astype(jnp.float32),
                        jnp.maximum(x_bf16, 0).astype(jnp.float32)), "mismatch (bf16)"

    print("KERNEL_OK")
</pallas_src>

<mosaic_0001>
module attributes {stable_mosaic.version = 11 : i64} {
  func.func @_relu_kernel(%arg0: i32, %arg1: memref<16x128xf32, #tpu.memory_space<vmem>>, %arg2: memref<16x128xf32, #tpu.memory_space<vmem>>) attributes {dimension_semantics = [#tpu.dimension_semantics<parallel>], iteration_bounds = array<i64: 1>, scalar_prefetch = 0 : i64, scratch_operands = 0 : i64, tpu.core_type = #tpu.core_type<tc>, window_params = [{transform_indices = @transform_0, window_bounds = array<i64: 16, 128>}, {transform_indices = @transform_1, window_bounds = array<i64: 16, 128>}]} {
    %c0 = arith.constant 0 : index
    %c0_0 = arith.constant 0 : index
    %0 = vector.load %arg1[%c0, %c0_0] : memref<16x128xf32, #tpu.memory_space<vmem>>, vector<16x128xf32>
    %cst = arith.constant 0.000000e+00 : f32
    %1 = vector.broadcast %cst : f32 to vector<16x128xf32>
    %2 = arith.maximumf %0, %1 : vector<16x128xf32>
    %c0_1 = arith.constant 0 : index
    %c0_2 = arith.constant 0 : index
    %3 = vector.load %arg2[%c0_1, %c0_2] : memref<16x128xf32, #tpu.memory_space<vmem>>, vector<16x128xf32>
    tpu.vector_store %arg2[%c0_1, %c0_2], %2 {strides = array<i32>} : memref<16x128xf32, #tpu.memory_space<vmem>>, vector<16x128xf32>,
    return
  }
  func.func @transform_0(%arg0: i32) -> (i32, i32) {
    %c0_i32 = arith.constant 0 : i32
    %c0_i32_0 = arith.constant 0 : i32
    return %arg0, %c0_i32 : i32, i32
  }
  func.func @transform_1(%arg0: i32) -> (i32, i32) {
    %c0_i32 = arith.constant 0 : i32
    %c0_i32_0 = arith.constant 0 : i32
    return %arg0, %c0_i32 : i32, i32
  }
}

</mosaic_0001>

<llo_original>
// kernel: _relu_forward.1
$region0: #{_relu_forward.1}
  #allocation0 [shape = 'u32[]', space=smem, size = 0x4, offset = 0x4, fixed_abs, tag = 'smem constant byte address 0x4 - core index']
  #allocation1 [shape = 'u32[72,128]{1,0:T(1,128)}', space=vmem, size = 0x9000, scoped, tag = 'internal scratch']
  %s0 = inlined_call_operand.vmem [shape: f32[16,128], index: 0, kind: input, shape index: {}]
  %s1 = inlined_call_operand.vmem [shape: f32[16,128], index: 1, kind: output, shape index: {}]
  %s2 = sld [smem:[#allocation0]]
  $region14: #{_relu_forward.1} parent=0
    _
  %s4 = ssub.s32 1, %s2
  %s5 = scalar_select 0, %s4, %s2
  // Predicated region
  $region2: #{_relu_forward.1} parent=0 // pred_check
    _
  $region3: #{_relu_forward.1} parent=0 // pred_check_branch
    %7 = sbr.rel (0) target = $region5
  $region4: #{_relu_forward.1} parent=0 // pred_region
    _
  $region5: #{_relu_forward.1} parent=0 // pred_fallthru
    _
  %v8 = vld [vmem:[%s0] sm:$0xff]
  %v9 = vld [vmem:[%s0 + $0x8] sm:$0xff]
  %v10 = vmax.f32 %v8, 0.0
  %v11 = vmax.f32 %v9, 0.0
  %12 = vst [vmem:[%s1] sm:$0xff] %v10
  %13 = vst [vmem:[%s1 + $0x8] sm:$0xff] %v11
  // Predicated region
  $region6: #{_relu_forward.1} parent=0 // pred_check
    _
  $region7: #{_relu_forward.1} parent=0 // pred_check_branch
    %15 = sbr.rel (0) target = $region9
  $region8: #{_relu_forward.1} parent=0 // pred_region
    _
  $region9: #{_relu_forward.1} parent=0 // pred_fallthru
    _
  // Predicated region
  $region10: #{_relu_forward.1} parent=0 // pred_check
    _
  $region11: #{_relu_forward.1} parent=0 // pred_check_branch
    %17 = sbr.rel (0) target = $region13
  $region12: #{_relu_forward.1} parent=0 // pred_region
    _
  $region13: #{_relu_forward.1} parent=0 // pred_fallthru
    _

</llo_original>
